<compile_context>
chip_gen: v7x
topology: tpu7x:2x2x1
jax: 0.10.0
libtpu: 0.0.40
codegen_flags: <defaults>
</compile_context>

<pallas_src>
import functools

import jax
import jax.numpy as jnp
from jax import lax
from jax.experimental import pallas as pl
from jax.experimental.pallas import tpu as pltpu

H1 = 400    # critic_fc1 out features
H2 = 300    # critic_fc2 out features
H1P = 512   # padded fc1 width: [fc1_out(400) | action(A) | zeros]
H2P = 384   # padded fc2 width


def _round_up(x, m):
    return ((x + m - 1) // m) * m


def critic_kernel(x_ref, w1_ref, b1_ref, w2_ref, b2_ref, w3_ref, b3_ref,
                  o_ref, *, action_size):
    # fc1 on [state | action]; augmented weight also routes the raw action
    # into columns [H1, H1 + A) (identity rows, zero bias there).
    x = x_ref[...]                                             # (tm, S+A) bf16
    pre = jnp.dot(x, w1_ref[...],
                  preferred_element_type=jnp.float32) + b1_ref[...]
    col = lax.broadcasted_iota(jnp.int32, pre.shape, 1)
    is_action = (col >= H1) & (col < H1 + action_size)
    # ReLU everywhere except the pass-through action columns (pads stay 0).
    h1 = jnp.where(is_action, pre, jnp.maximum(pre, 0.0))      # (tm, 512) f32

    # fc2: single K=512 bf16 MXU pass over the fused block, then ReLU.
    h2 = jnp.dot(h1.astype(jnp.bfloat16), w2_ref[...],
                 preferred_element_type=jnp.float32) + b2_ref[...]
    h2 = jnp.maximum(h2, 0.0)                                  # (tm, 384) f32

    # fc3 (N=1): VPU multiply + lane reduction, keep the MXU free.
    o_ref[...] = jnp.sum(h2 * w3_ref[...], axis=-1, keepdims=True) + b3_ref[...]


def prepare_params(params, state_size, action_size):
    """One-time weight prep (hoisted out of the per-call hot path).

    PyTorch-shaped weights (out, in) -> transposed, zero-padded, bf16.
    """
    w1, b1, w2, b2, w3, b3 = params
    S, A = state_size, action_size

    # Augmented fc1 weight: [state | action] (S+A) -> H1P.
    w1_aug = jnp.zeros((S + A, H1P), jnp.float32)
    w1_aug = w1_aug.at[:S, :H1].set(w1.T)
    w1_aug = w1_aug.at[S:, H1:H1 + A].set(jnp.eye(A, dtype=jnp.float32))
    b1_pad = jnp.zeros((1, H1P), jnp.float32).at[0, :H1].set(b1)

    # Combined fc2 weight over the padded 512-wide fused block.
    w2c = jnp.zeros((H1P, H2P), jnp.float32)
    w2c = w2c.at[:H1, :H2].set(w2[:, :H1].T)          # fc1-output part
    w2c = w2c.at[H1:H1 + A, :H2].set(w2[:, H1:].T)    # action part
    b2_pad = jnp.zeros((1, H2P), jnp.float32).at[0, :H2].set(b2)

    # fc3 as a padded row (used with a VPU reduce, not the MXU).
    w3_row = jnp.zeros((1, H2P), jnp.float32).at[0, :H2].set(w3[0])
    b3_r = b3.reshape(1, 1).astype(jnp.float32)

    return (w1_aug.astype(jnp.bfloat16), b1_pad,
            w2c.astype(jnp.bfloat16), b2_pad, w3_row, b3_r)


def critic_forward(state, action, prep, *, block_rows=512):
    """state: (B, S), action: (B, A), prep from prepare_params -> (B, 1) f32."""
    w1_aug, b1_pad, w2c, b2_pad, w3_row, b3_r = prep
    B = state.shape[0]
    A = action.shape[1]

    # Single fused input stream [state | action]; bf16 for DMA + MXU rate.
    x = jnp.concatenate([state, action], axis=1).astype(jnp.bfloat16)
    SA = x.shape[1]

    # Batch tile: 512 rows (~2 MB of f32 activations per tile -> safe on the
    # 64 MiB-VMEM v7x as well as v5e/v6e); small batches use one padded tile.
    tm = block_rows if B >= block_rows else max(8, _round_up(B, 8))
    B_pad = _round_up(B, tm)
    if B_pad != B:
        x = jnp.pad(x, ((0, B_pad - B), (0, 0)))
    n_tiles = B_pad // tm

    flops = 2 * B_pad * (SA * H1P + H1P * H2P + H2P)
    bytes_accessed = (x.size * 2 + w1_aug.size * 2 + w2c.size * 2
                      + (b1_pad.size + b2_pad.size + w3_row.size + 1) * 4
                      + B_pad * 4)

    kernel = functools.partial(critic_kernel, action_size=A)
    out = pl.pallas_call(
        kernel,
        out_shape=jax.ShapeDtypeStruct((B_pad, 1), jnp.float32),
        grid_spec=pltpu.PrefetchScalarGridSpec(
            num_scalar_prefetch=0,
            grid=(n_tiles,),
            in_specs=[
                pl.BlockSpec((tm, SA), lambda i: (i, 0)),     # [state|action]
                pl.BlockSpec((SA, H1P), lambda i: (0, 0)),    # w1 (resident)
                pl.BlockSpec((1, H1P), lambda i: (0, 0)),     # b1
                pl.BlockSpec((H1P, H2P), lambda i: (0, 0)),   # w2 (resident)
                pl.BlockSpec((1, H2P), lambda i: (0, 0)),     # b2
                pl.BlockSpec((1, H2P), lambda i: (0, 0)),     # w3 row
                pl.BlockSpec((1, 1), lambda i: (0, 0)),       # b3
            ],
            out_specs=pl.BlockSpec((tm, 1), lambda i: (i, 0)),
        ),
        compiler_params=pltpu.CompilerParams(
            dimension_semantics=("parallel",),
            vmem_limit_bytes=32 * 1024 * 1024),
        cost_estimate=pl.CostEstimate(
            flops=flops, transcendentals=0, bytes_accessed=bytes_accessed),
    )(x, w1_aug, b1_pad, w2c, b2_pad, w3_row, b3_r)
    return out[:B]


def init_params(key, state_size, action_size):
    """Deterministic synthetic init (PyTorch-shaped weights: (out, in))."""
    ks = jax.random.split(key, 6)
    w1 = jax.random.uniform(ks[0], (H1, state_size), jnp.float32, -0.05, 0.05)
    b1 = jax.random.uniform(ks[1], (H1,), jnp.float32, -0.05, 0.05)
    w2 = jax.random.uniform(ks[2], (H2, H1 + action_size), jnp.float32, -0.05, 0.05)
    b2 = jax.random.uniform(ks[3], (H2,), jnp.float32, -0.05, 0.05)
    w3 = jax.random.uniform(ks[4], (1, H2), jnp.float32, -0.003, 0.003)
    b3 = jax.random.uniform(ks[5], (1,), jnp.float32, -0.003, 0.003)
    return (w1, b1, w2, b2, w3, b3)


def reference_forward(state, action, params):
    w1, b1, w2, b2, w3, b3 = params
    x = jnp.maximum(state @ w1.T + b1, 0.0)
    x = jnp.concatenate([x, action], axis=1)
    x = jnp.maximum(x @ w2.T + b2, 0.0)
    return x @ w3.T + b3


if __name__ == "__main__":
    key = jax.random.PRNGKey(0)
    k_state, k_action, k_params = jax.random.split(key, 3)

    batch = 2
    state_size = 16
    action_size = 4

    state = jax.random.normal(k_state, (batch, state_size), jnp.float32)
    action = jax.random.normal(k_action, (batch, action_size), jnp.float32)
    params = init_params(k_params, state_size, action_size)

    # Weight prep happens ONCE (per parameter update), not per forward call.
    prep = jax.tree_util.tree_map(jax.block_until_ready,
                                  prepare_params(params, state_size, action_size))

    out = critic_forward(state, action, prep)
    out = jax.block_until_ready(out)

    ref = reference_forward(state, action, params)
    assert out.shape == (batch, 1), out.shape
    # bf16 weights/activations with f32 accumulation -> loosened tolerance.
    assert jnp.allclose(out, ref, atol=5e-3, rtol=5e-2), (out, ref)

    print("KERNEL_OK")
</pallas_src>

<mosaic_0001>
module attributes {stable_mosaic.version = 11 : i64} {
  func.func @critic_kernel(%arg0: i32, %arg1: memref<8x20xbf16, #tpu.memory_space<vmem>>, %arg2: memref<20x512xbf16, #tpu.memory_space<vmem>>, %arg3: memref<1x512xf32, #tpu.memory_space<vmem>>, %arg4: memref<512x384xbf16, #tpu.memory_space<vmem>>, %arg5: memref<1x384xf32, #tpu.memory_space<vmem>>, %arg6: memref<1x384xf32, #tpu.memory_space<vmem>>, %arg7: memref<1x1xf32, #tpu.memory_space<vmem>>, %arg8: memref<8x1xf32, #tpu.memory_space<vmem>>) attributes {dimension_semantics = [#tpu.dimension_semantics<parallel>], iteration_bounds = array<i64: 1>, scalar_prefetch = 0 : i64, scratch_operands = 0 : i64, tpu.core_type = #tpu.core_type<tc>, window_params = [{transform_indices = @transform_0, window_bounds = array<i64: 8, 20>}, {pipeline_mode = #tpu.pipeline_mode<synchronous>, transform_indices = @transform_1, window_bounds = array<i64: 20, 512>}, {pipeline_mode = #tpu.pipeline_mode<synchronous>, transform_indices = @transform_2, window_bounds = array<i64: 1, 512>}, {pipeline_mode = #tpu.pipeline_mode<synchronous>, transform_indices = @transform_3, window_bounds = array<i64: 512, 384>}, {pipeline_mode = #tpu.pipeline_mode<synchronous>, transform_indices = @transform_4, window_bounds = array<i64: 1, 384>}, {pipeline_mode = #tpu.pipeline_mode<synchronous>, transform_indices = @transform_5, window_bounds = array<i64: 1, 384>}, {pipeline_mode = #tpu.pipeline_mode<synchronous>, transform_indices = @transform_6, window_bounds = array<i64: 1, 1>}, {transform_indices = @transform_7, window_bounds = array<i64: 8, 1>}]} {
    %c0 = arith.constant 0 : index
    %c0_0 = arith.constant 0 : index
    %0 = vector.load %arg1[%c0, %c0_0] : memref<8x20xbf16, #tpu.memory_space<vmem>>, vector<8x20xbf16>
    %c0_1 = arith.constant 0 : index
    %c0_2 = arith.constant 0 : index
    %1 = vector.load %arg2[%c0_1, %c0_2] : memref<20x512xbf16, #tpu.memory_space<vmem>>, vector<20x512xbf16>
    %cst = arith.constant dense<0.000000e+00> : vector<8x512xf32>
    %2 = tpu.matmul %0, %1, %cst {dimension_numbers = #tpu.dot_dimension_numbers<[1], [0], [0], [1], [0, 0, 1, 1], [], []>} : vector<8x20xbf16>, vector<20x512xbf16>, vector<8x512xf32> -> vector<8x512xf32>
    %c0_3 = arith.constant 0 : index
    %c0_4 = arith.constant 0 : index
    %3 = vector.load %arg3[%c0_3, %c0_4] : memref<1x512xf32, #tpu.memory_space<vmem>>, vector<1x512xf32>
    %4 = vector.broadcast %3 : vector<1x512xf32> to vector<8x512xf32>
    %5 = arith.addf %2, %4 : vector<8x512xf32>
    %6 = tpu.iota {dimensions = array<i32: 1>} : vector<8x512xi32>
    %c400_i32 = arith.constant 400 : i32
    %7 = vector.broadcast %c400_i32 : i32 to vector<8x512xi32>
    %8 = arith.cmpi sge, %6, %7 : vector<8x512xi32>
    %c404_i32 = arith.constant 404 : i32
    %9 = vector.broadcast %c404_i32 : i32 to vector<8x512xi32>
    %10 = arith.cmpi slt, %6, %9 : vector<8x512xi32>
    %11 = arith.andi %8, %10 : vector<8x512xi1>
    %cst_5 = arith.constant 0.000000e+00 : f32
    %12 = vector.broadcast %cst_5 : f32 to vector<8x512xf32>
    %13 = arith.maximumf %5, %12 : vector<8x512xf32>
    %14 = arith.select %11, %5, %13 : vector<8x512xi1>, vector<8x512xf32>
    %15 = arith.truncf %14 : vector<8x512xf32> to vector<8x512xbf16>
    %c0_6 = arith.constant 0 : index
    %c0_7 = arith.constant 0 : index
    %16 = vector.load %arg4[%c0_6, %c0_7] : memref<512x384xbf16, #tpu.memory_space<vmem>>, vector<512x384xbf16>
    %cst_8 = arith.constant dense<0.000000e+00> : vector<8x384xf32>
    %17 = tpu.matmul %15, %16, %cst_8 {dimension_numbers = #tpu.dot_dimension_numbers<[1], [0], [0], [1], [0, 0, 1, 1], [], []>} : vector<8x512xbf16>, vector<512x384xbf16>, vector<8x384xf32> -> vector<8x384xf32>
    %c0_9 = arith.constant 0 : index
    %c0_10 = arith.constant 0 : index
    %18 = vector.load %arg5[%c0_9, %c0_10] : memref<1x384xf32, #tpu.memory_space<vmem>>, vector<1x384xf32>
    %19 = vector.broadcast %18 : vector<1x384xf32> to vector<8x384xf32>
    %20 = arith.addf %17, %19 : vector<8x384xf32>
    %cst_11 = arith.constant 0.000000e+00 : f32
    %21 = vector.broadcast %cst_11 : f32 to vector<8x384xf32>
    %22 = arith.maximumf %20, %21 : vector<8x384xf32>
    %c0_12 = arith.constant 0 : index
    %c0_13 = arith.constant 0 : index
    %23 = vector.load %arg6[%c0_12, %c0_13] : memref<1x384xf32, #tpu.memory_space<vmem>>, vector<1x384xf32>
    %24 = vector.broadcast %23 : vector<1x384xf32> to vector<8x384xf32>
    %25 = arith.mulf %22, %24 : vector<8x384xf32>
    %cst_14 = arith.constant dense<0.000000e+00> : vector<8xf32>
    %26 = vector.multi_reduction <add>, %25, %cst_14 [1] : vector<8x384xf32> to vector<8xf32>
    %27 = vector.shape_cast %26 : vector<8xf32> to vector<8x1xf32>
    %c0_15 = arith.constant 0 : index
    %c0_16 = arith.constant 0 : index
    %28 = vector.load %arg7[%c0_15, %c0_16] : memref<1x1xf32, #tpu.memory_space<vmem>>, vector<1x1xf32>
    %29 = vector.broadcast %28 : vector<1x1xf32> to vector<8x1xf32>
    %30 = arith.addf %27, %29 : vector<8x1xf32>
    %c0_17 = arith.constant 0 : index
    %c0_18 = arith.constant 0 : index
    %31 = vector.load %arg8[%c0_17, %c0_18] : memref<8x1xf32, #tpu.memory_space<vmem>>, vector<8x1xf32>
    tpu.vector_store %arg8[%c0_17, %c0_18], %30 {strides = array<i32>} : memref<8x1xf32, #tpu.memory_space<vmem>>, vector<8x1xf32>,
    return
  }
  func.func @transform_0(%arg0: i32) -> (i32, i32) {
    %c0_i32 = arith.constant 0 : i32
    %c0_i32_0 = arith.constant 0 : i32
    return %arg0, %c0_i32 : i32, i32
  }
  func.func @transform_1(%arg0: i32) -> (i32, i32) {
    %c0_i32 = arith.constant 0 : i32
    %c0_i32_0 = arith.constant 0 : i32
    %c0_i32_1 = arith.constant 0 : i32
    return %c0_i32, %c0_i32_0 : i32, i32
  }
  func.func @transform_2(%arg0: i32) -> (i32, i32) {
    %c0_i32 = arith.constant 0 : i32
    %c0_i32_0 = arith.constant 0 : i32
    %c0_i32_1 = arith.constant 0 : i32
    return %c0_i32, %c0_i32_0 : i32, i32
  }
  func.func @transform_3(%arg0: i32) -> (i32, i32) {
    %c0_i32 = arith.constant 0 : i32
    %c0_i32_0 = arith.constant 0 : i32
    %c0_i32_1 = arith.constant 0 : i32
    return %c0_i32, %c0_i32_0 : i32, i32
  }
  func.func @transform_4(%arg0: i32) -> (i32, i32) {
    %c0_i32 = arith.constant 0 : i32
    %c0_i32_0 = arith.constant 0 : i32
    %c0_i32_1 = arith.constant 0 : i32
    return %c0_i32, %c0_i32_0 : i32, i32
  }
  func.func @transform_5(%arg0: i32) -> (i32, i32) {
    %c0_i32 = arith.constant 0 : i32
    %c0_i32_0 = arith.constant 0 : i32
    %c0_i32_1 = arith.constant 0 : i32
    return %c0_i32, %c0_i32_0 : i32, i32
  }
  func.func @transform_6(%arg0: i32) -> (i32, i32) {
    %c0_i32 = arith.constant 0 : i32
    %c0_i32_0 = arith.constant 0 : i32
    %c0_i32_1 = arith.constant 0 : i32
    return %c0_i32, %c0_i32_0 : i32, i32
  }
  func.func @transform_7(%arg0: i32) -> (i32, i32) {
    %c0_i32 = arith.constant 0 : i32
    %c0_i32_0 = arith.constant 0 : i32
    return %arg0, %c0_i32 : i32, i32
  }
}

</mosaic_0001>

<llo_original>
// kernel: tpu_custom_call.1
$region0: #{tpu_custom_call.1}
  #allocation0 [shape = 'u32[]', space=smem, size = 0x4, offset = 0x4, fixed_abs, tag = 'smem constant byte address 0x4 - core index']
  #allocation1 [shape = 'u32[144,128]{1,0:T(1,128)}', space=vmem, size = 0x12000, scoped, tag = 'internal scratch']
  #allocation2 [shape = 'f32[1,1]{1,0:T(1,128)S(1)}', space=vmem, size = 0x200, scoped, tag = 'scoped memory for tpu_custom_call.1']
  %s0 = inlined_call_operand.hbm [shape: bf16[8,20], index: 0, kind: input, shape index: {}]
  %s1 = inlined_call_operand.hbm [shape: bf16[20,512], index: 1, kind: input, shape index: {}]
  %s2 = inlined_call_operand.vmem [shape: f32[1,512], index: 2, kind: input, shape index: {}]
  %s3 = inlined_call_operand.hbm [shape: bf16[512,384], index: 3, kind: input, shape index: {}]
  %s4 = inlined_call_operand.vmem [shape: f32[1,384], index: 4, kind: input, shape index: {}]
  %s5 = inlined_call_operand.vmem [shape: f32[1,384], index: 5, kind: input, shape index: {}]
  %s6 = inlined_call_operand.<no memory space> [shape: f32[1,1], index: 6, kind: input, shape index: {}]
  %s7 = inlined_call_operand.vmem [shape: f32[8,1], index: 7, kind: output, shape index: {}]
  %s8 = sld [smem:[#allocation0]]
  $region50: #{tpu_custom_call.1} parent=0
    _
  %s10 = ssub.s32 1, %s8
  %s11 = scalar_select 0, %s10, %s8
  %v12 = vstv %s6
  %13 = vst [vmem:[#allocation2] sm:$0x1] %v12
  $region1: #{tpu_custom_call.1} parent=0
    #allocation3 [shape = 'u8[2048]{0}', space=vmem, size = 0x800, scoped, tag = 'input window, operand 0, single buffered']
    #allocation4 [shape = 's32[1]{0}', space=sflag, size = 0x4, scoped, tag = 'scoped memory for tpu_custom_call.1']
    #allocation5 [shape = 'u8[24576]{0}', space=vmem, size = 0x6000, scoped, tag = 'input window, operand 1, single buffered']
    #allocation6 [shape = 's32[1]{0}', space=sflag, size = 0x4, scoped, tag = 'scoped memory for tpu_custom_call.1']
    #allocation7 [shape = 'u8[393216]{0}', space=vmem, size = 0x60000, scoped, tag = 'input window, operand 3, single buffered']
    %14 = vsyncpa [#allocation4], 0
    %15 = vsyncpa [#allocation6], 0
    // Predicated region
    $region2: #{tpu_custom_call.1} parent=1 // pred_check
      _
    $region3: #{tpu_custom_call.1} parent=1 // pred_check_branch
      %17 = sbr.rel (0) target = $region5
    $region4: #{tpu_custom_call.1} parent=1 // pred_region
      %s19 = ssub.s32 64, 64
      %20 = vsyncadd [#allocation4], %s19
      %s22 = sshll.u32 [#allocation3], 4
      %s23 = int_to_ptr.vmem [resolvable:$true] %s22
      %25 = dma.hbm_to_vmem [thread:$0]  %s0, 64, %s23, [#allocation4]
    $region5: #{tpu_custom_call.1} parent=1 // pred_fallthru
      _
    // Predicated region
    $region6: #{tpu_custom_call.1} parent=1 // pred_check
      _
    $region7: #{tpu_custom_call.1} parent=1 // pred_check_branch
      %27 = sbr.rel (0) target = $region9
    $region8: #{tpu_custom_call.1} parent=1 // pred_region
      %s29 = ssub.s32 768, 768
      %30 = vsyncadd [#allocation6], %s29
      %s31 = sshll.u32 [#allocation5], 4
      %s32 = int_to_ptr.vmem [resolvable:$true] %s31
      %37 = dma.hbm_to_vmem [thread:$0]  %s1, 768, %s32, [#allocation6], 256, 256, 16
    $region9: #{tpu_custom_call.1} parent=1 // pred_fallthru
      _
    // Predicated region
    $region10: #{tpu_custom_call.1} parent=1 // pred_check
      _
    $region11: #{tpu_custom_call.1} parent=1 // pred_check_branch
      %39 = sbr.rel (0) target = $region13
    $region12: #{tpu_custom_call.1} parent=1 // pred_region
      _
    $region13: #{tpu_custom_call.1} parent=1 // pred_fallthru
      _
    // Predicated region
    $region14: #{tpu_custom_call.1} parent=1 // pred_check
      _
    $region15: #{tpu_custom_call.1} parent=1 // pred_check_branch
      %41 = sbr.rel (0) target = $region17
    $region16: #{tpu_custom_call.1} parent=1 // pred_region
      %s43 = ssub.s32 12288, 12288
      %44 = vsyncadd [#allocation6], %s43
      %s45 = sshll.u32 [#allocation7], 4
      %s46 = int_to_ptr.vmem [resolvable:$true] %s45
      %51 = dma.hbm_to_vmem [thread:$0]  %s3, 12288, %s46, [#allocation6], 192, 192, 12
    $region17: #{tpu_custom_call.1} parent=1 // pred_fallthru
      _
    // Predicated region
    $region18: #{tpu_custom_call.1} parent=1 // pred_check
      _
    $region19: #{tpu_custom_call.1} parent=1 // pred_check_branch
      %53 = sbr.rel (0) target = $region21
    $region20: #{tpu_custom_call.1} parent=1 // pred_region
      _
    $region21: #{tpu_custom_call.1} parent=1 // pred_fallthru
      _
    // Predicated region
    $region22: #{tpu_custom_call.1} parent=1 // pred_check
      _
    $region23: #{tpu_custom_call.1} parent=1 // pred_check_branch
      %55 = sbr.rel (0) target = $region25
    $region24: #{tpu_custom_call.1} parent=1 // pred_region
      _
    $region25: #{tpu_custom_call.1} parent=1 // pred_fallthru
      _
    // Predicated region
    $region26: #{tpu_custom_call.1} parent=1 // pred_check
      _
    $region27: #{tpu_custom_call.1} parent=1 // pred_check_branch
      %57 = sbr.rel (0) target = $region29
    $region28: #{tpu_custom_call.1} parent=1 // pred_region
      _
    $region29: #{tpu_custom_call.1} parent=1 // pred_fallthru
      _
    // Predicated region
    $region30: #{tpu_custom_call.1} parent=1 // pred_check
      _
    $region31: #{tpu_custom_call.1} parent=1 // pred_check_branch
      %59 = sbr.rel (0) target = $region33
    $region32: #{tpu_custom_call.1} parent=1 // pred_region
      %60 = dma.done [#allocation4], 64
    $region33: #{tpu_custom_call.1} parent=1 // pred_fallthru
      _
    // Predicated region
    $region34: #{tpu_custom_call.1} parent=1 // pred_check
      _
    $region35: #{tpu_custom_call.1} parent=1 // pred_check_branch
      %62 = sbr.rel (0) target = $region37
    $region36: #{tpu_custom_call.1} parent=1 // pred_region
      %63 = dma.done [#allocation6], 768
    $region37: #{tpu_custom_call.1} parent=1 // pred_fallthru
      _
    // Predicated region
    $region38: #{tpu_custom_call.1} parent=1 // pred_check
      _
    $region39: #{tpu_custom_call.1} parent=1 // pred_check_branch
      %65 = sbr.rel (0) target = $region41
    $region40: #{tpu_custom_call.1} parent=1 // pred_region
      %66 = dma.done [#allocation6], 12288
    $region41: #{tpu_custom_call.1} parent=1 // pred_fallthru
      _
    %v68 = vld [vmem:[#allocation3] sm:$0xf]
    %v69 = vld [vmem:[#allocation5] sm:$0xff]
    %v70 = vld [vmem:[#allocation5 + $0x8] sm:$0xff]
    %v71 = vld [vmem:[#allocation5 + $0x10] sm:$0xff]
    %v72 = vld [vmem:[#allocation5 + $0x18] sm:$0xff]
    %v73 = vld [vmem:[#allocation5 + $0x20] sm:$0x33]
    %v74 = vld [vmem:[#allocation5 + $0x28] sm:$0x33]
    %v75 = vld [vmem:[%s2] sm:$0xf]
    %v77 = vlaneseq
    %v78 = vshrl.u32 %v77, 7
    %v79 = vsub.s32 0, %v78
    %v80 = vrot.slane %v75, %v79
    %v81 = vlaneseq
    %v82 = vshrl.u32 %v81, 7
    %v83 = vsub.s32 1, %v82
    %v84 = vrot.slane %v75, %v83
    %v85 = vlaneseq
    %v86 = vshrl.u32 %v85, 7
    %v87 = vsub.s32 2, %v86
    %v88 = vrot.slane %v75, %v87
    %v89 = vlaneseq
    %v90 = vshrl.u32 %v89, 7
    %v91 = vsub.s32 3, %v90
    %v92 = vrot.slane %v75, %v91
    %v103 = vunpack.c.l.b16 %v69
    %v104 = vunpack.c.h.b16 %v69
    %v105 = vunpack.c.l.b16 %v70
    %v106 = vunpack.c.h.b16 %v70
    %v107 = vunpack.c.l.b16 %v71
    %v108 = vunpack.c.h.b16 %v71
    %v109 = vunpack.c.l.b16 %v72
    %v110 = vunpack.c.h.b16 %v72
    %v111 = vunpack.c.l.b16 %v73
    %v112 = vunpack.c.h.b16 %v73
    %v113 = vunpack.c.l.b16 %v74
    %v114 = vunpack.c.h.b16 %v74
    %v115 = vpack.c.b16 %v107, %v103
    %v116 = vpack.c.b16 %v108, %v104
    %v117 = vpack.c.b16 %v109, %v105
    %v118 = vpack.c.b16 %v110, %v106
    %v119 = vpack.c.b16 %v111, %v111
    %v120 = vpack.c.b16 %v112, %v112
    %v121 = vpack.c.b16 %v113, %v113
    %v122 = vpack.c.b16 %v114, %v114
    %vm127 = vcmask 162816
    %v129 = vsel %vm127, %v68, 0
    %vm131 = vcmask 1041408
    %v133 = vsel %vm131, %v119, 0
    %v136 = vsel %vm131, %v120, 0
    %v139 = vsel %vm131, %v121, 0
    %v142 = vsel %vm131, %v122, 0
    %144 = vmatprep.subr.bf16.mxu0 %v116
    %145 = vmatpush1.bf16.msra.mxu0 %v115
    %146 = vmatprep.subr.bf16.mxu0 %v136
    %147 = vmatpush1.bf16.msra.mxu0 %v133
    %148 = vmatprep.subr.bf16.mxu0 0
    %149 = vmatpush1.bf16.msra.mxu0 0
    %150 = vmatprep.subr.bf16.mxu0 0
    %151 = vmatpush1.bf16.msra.mxu0 0
    %152 = vmatprep.subr.bf16.mxu0 0
    %153 = vmatpush1.bf16.msra.mxu0 0
    %154 = vmatprep.subr.bf16.mxu0 0
    %155 = vmatpush1.bf16.msra.mxu0 0
    %156 = vmatprep.subr.bf16.mxu0 0
    %157 = vmatpush1.bf16.msra.mxu0 0
    %158 = vmatprep.subr.bf16.mxu0 0
    %159 = vmatpush1.bf16.msra.mxu0 0
    %160 = vmatprep.subr.bf16.mxu0 0
    %161 = vmatpush1.bf16.msra.mxu0 0
    %162 = vmatprep.subr.bf16.mxu0 0
    %163 = vmatpush1.bf16.msra.mxu0 0
    %164 = vmatprep.subr.bf16.mxu0 0
    %165 = vmatpush1.bf16.msra.mxu0 0
    %166 = vmatprep.subr.bf16.mxu0 0
    %167 = vmatpush1.bf16.msra.mxu0 0
    %168 = vmatprep.subr.bf16.mxu0 0
    %169 = vmatpush1.bf16.msra.mxu0 0
    %170 = vmatprep.subr.bf16.mxu0 0
    %171 = vmatpush1.bf16.msra.mxu0 0
    %172 = vmatprep.subr.bf16.mxu0 0
    %173 = vmatpush1.bf16.msra.mxu0 0
    %174 = vmatprep.subr.bf16.mxu0 0
    %175 = vmatpush1.bf16.msra.mxu0 0
    %176 = vmatprep.mubr.bf16.mxu0 0
    %177 = vmatmul.mubr.bf16.gmra.mrb[0].mxu0 %v129
    %v178 = vpop.f32.mrb[0].mxu0
    %v179 = vadd.f32 %v80, %v178
    %v180 = vpop.f32.mrb[0].mxu0
    %v181 = vadd.f32 %v84, %v180
    %v182 = vpop.f32.mrb[0].mxu0
    %v183 = vpop.f32.mrb[0].mxu0
    %184 = vdwg.mxu0
    %185 = vmatprep.subr.bf16.mxu0 %v118
    %186 = vmatpush1.bf16.msra.mxu0 %v117
    %187 = vmatprep.subr.bf16.mxu0 %v142
    %188 = vmatpush1.bf16.msra.mxu0 %v139
    %189 = vmatprep.subr.bf16.mxu0 0
    %190 = vmatpush1.bf16.msra.mxu0 0
    %191 = vmatprep.subr.bf16.mxu0 0
    %192 = vmatpush1.bf16.msra.mxu0 0
    %193 = vmatprep.subr.bf16.mxu0 0
    %194 = vmatpush1.bf16.msra.mxu0 0
    %195 = vmatprep.subr.bf16.mxu0 0
    %196 = vmatpush1.bf16.msra.mxu0 0
    %197 = vmatprep.subr.bf16.mxu0 0
    %198 = vmatpush1.bf16.msra.mxu0 0
    %199 = vmatprep.subr.bf16.mxu0 0
    %200 = vmatpush1.bf16.msra.mxu0 0
    %201 = vmatprep.subr.bf16.mxu0 0
    %202 = vmatpush1.bf16.msra.mxu0 0
    %203 = vmatprep.subr.bf16.mxu0 0
    %204 = vmatpush1.bf16.msra.mxu0 0
    %205 = vmatprep.subr.bf16.mxu0 0
    %206 = vmatpush1.bf16.msra.mxu0 0
    %207 = vmatprep.subr.bf16.mxu0 0
    %208 = vmatpush1.bf16.msra.mxu0 0
    %209 = vmatprep.subr.bf16.mxu0 0
    %210 = vmatpush1.bf16.msra.mxu0 0
    %211 = vmatprep.subr.bf16.mxu0 0
    %212 = vmatpush1.bf16.msra.mxu0 0
    %213 = vmatprep.subr.bf16.mxu0 0
    %214 = vmatpush1.bf16.msra.mxu0 0
    %215 = vmatprep.subr.bf16.mxu0 0
    %216 = vmatpush1.bf16.msra.mxu0 0
    %217 = vmatprep.mubr.bf16.mxu0 0
    %218 = vmatmul.mubr.bf16.gmra.mrb[0].mxu0 %v129
    %v219 = vpop.f32.mrb[0].mxu0
    %v220 = vadd.f32 %v88, %v219
    %v221 = vpop.f32.mrb[0].mxu0
    %v222 = vadd.f32 %v92, %v221
    %v223 = vpop.f32.mrb[0].mxu0
    %v224 = vpop.f32.mrb[0].mxu0
    %225 = vdwg.mxu0
    %v226 = vlaneseq
    %v227 = vand.u32 %v226, 127
    %v228 = vadd.s32 %v227, 128
    %v229 = vadd.s32 %v227, 256
    %v230 = vadd.s32 %v227, 384
    %vm231 = vcmp.ge.s32.totalorder %v227, 400
    %vm232 = vcmp.ge.s32.totalorder %v228, 400
    %vm233 = vcmp.ge.s32.totalorder %v229, 400
    %vm234 = vcmp.ge.s32.totalorder %v230, 400
    %vm235 = vcmp.lt.s32.totalorder %v227, 404
    %vm236 = vcmp.lt.s32.totalorder %v228, 404
    %vm237 = vcmp.lt.s32.totalorder %v229, 404
    %vm238 = vcmp.lt.s32.totalorder %v230, 404
    %vm239 = vmand %vm231, %vm235
    %vm240 = vmand %vm232, %vm236
    %vm241 = vmand %vm233, %vm237
    %vm242 = vmand %vm234, %vm238
    %v243 = vmax.f32 %v179, 0.0
    %v244 = vmax.f32 %v181, 0.0
    %v245 = vmax.f32 %v220, 0.0
    %v246 = vmax.f32 %v222, 0.0
    %v247 = vsel %vm239, %v179, %v243
    %v248 = vsel %vm240, %v181, %v244
    %v249 = vsel %vm241, %v220, %v245
    %v250 = vsel %vm242, %v222, %v246
    %v251 = vpack.c.bf16 %v247, %v247
    %v252 = vpack.c.bf16 %v248, %v248
    %v253 = vpack.c.bf16 %v249, %v249
    %v254 = vpack.c.bf16 %v250, %v250
    %v255 = vld [vmem:[#allocation7] sm:$0xff]
    %v256 = vld [vmem:[#allocation7 + $0x8] sm:$0xf]
    %v257 = vld [vmem:[#allocation7 + $0xc] sm:$0xff]
    %v258 = vld [vmem:[#allocation7 + $0x14] sm:$0xf]
    %v259 = vld [vmem:[#allocation7 + $0x18] sm:$0xff]
    %v260 = vld [vmem:[#allocation7 + $0x20] sm:$0xf]
    %v261 = vld [vmem:[#allocation7 + $0x24] sm:$0xff]
    %v262 = vld [vmem:[#allocation7 + $0x2c] sm:$0xf]
    %v263 = vld [vmem:[#allocation7 + $0x30] sm:$0xff]
    %v264 = vld [vmem:[#allocation7 + $0x38] sm:$0xf]
    %v265 = vld [vmem:[#allocation7 + $0x3c] sm:$0xff]
    %v266 = vld [vmem:[#allocation7 + $0x44] sm:$0xf]
    %v267 = vld [vmem:[#allocation7 + $0x48] sm:$0xff]
    %v268 = vld [vmem:[#allocation7 + $0x50] sm:$0xf]
    %v269 = vld [vmem:[#allocation7 + $0x54] sm:$0xff]
    %v270 = vld [vmem:[#allocation7 + $0x5c] sm:$0xf]
    %v271 = vld [vmem:[#allocation7 + $0x60] sm:$0xff]
    %v272 = vld [vmem:[#allocation7 + $0x68] sm:$0xf]
    %v273 = vld [vmem:[#allocation7 + $0x6c] sm:$0xff]
    %v274 = vld [vmem:[#allocation7 + $0x74] sm:$0xf]
    %v275 = vld [vmem:[#allocation7 + $0x78] sm:$0xff]
    %v276 = vld [vmem:[#allocation7 + $0x80] sm:$0xf]
    %v277 = vld [vmem:[#allocation7 + $0x84] sm:$0xff]
    %v278 = vld [vmem:[#allocation7 + $0x8c] sm:$0xf]
    %v279 = vld [vmem:[#allocation7 + $0x90] sm:$0xff]
    %v280 = vld [vmem:[#allocation7 + $0x98] sm:$0xf]
    %v281 = vld [vmem:[#allocation7 + $0x9c] sm:$0xff]
    %v282 = vld [vmem:[#allocation7 + $0xa4] sm:$0xf]
    %v283 = vld [vmem:[#allocation7 + $0xa8] sm:$0xff]
    %v284 = vld [vmem:[#allocation7 + $0xb0] sm:$0xf]
    %v285 = vld [vmem:[#allocation7 + $0xb4] sm:$0xff]
    %v286 = vld [vmem:[#allocation7 + $0xbc] sm:$0xf]
    %v287 = vld [vmem:[#allocation7 + $0xc0] sm:$0xff]
    %v288 = vld [vmem:[#allocation7 + $0xc8] sm:$0xf]
    %v289 = vld [vmem:[#allocation7 + $0xcc] sm:$0xff]
    %v290 = vld [vmem:[#allocation7 + $0xd4] sm:$0xf]
    %v291 = vld [vmem:[#allocation7 + $0xd8] sm:$0xff]
    %v292 = vld [vmem:[#allocation7 + $0xe0] sm:$0xf]
    %v293 = vld [vmem:[#allocation7 + $0xe4] sm:$0xff]
    %v294 = vld [vmem:[#allocation7 + $0xec] sm:$0xf]
    %v295 = vld [vmem:[#allocation7 + $0xf0] sm:$0xff]
    %v296 = vld [vmem:[#allocation7 + $0xf8] sm:$0xf]
    %v297 = vld [vmem:[#allocation7 + $0xfc] sm:$0xff]
    %v298 = vld [vmem:[#allocation7 + $0x104] sm:$0xf]
    %v299 = vld [vmem:[#allocation7 + $0x108] sm:$0xff]
    %v300 = vld [vmem:[#allocation7 + $0x110] sm:$0xf]
    %v301 = vld [vmem:[#allocation7 + $0x114] sm:$0xff]
    %v302 = vld [vmem:[#allocation7 + $0x11c] sm:$0xf]
    %v303 = vld [vmem:[#allocation7 + $0x120] sm:$0xff]
    %v304 = vld [vmem:[#allocation7 + $0x128] sm:$0xf]
    %v305 = vld [vmem:[#allocation7 + $0x12c] sm:$0xff]
    %v306 = vld [vmem:[#allocation7 + $0x134] sm:$0xf]
    %v307 = vld [vmem:[#allocation7 + $0x138] sm:$0xff]
    %v308 = vld [vmem:[#allocation7 + $0x140] sm:$0xf]
    %v309 = vld [vmem:[#allocation7 + $0x144] sm:$0xff]
    %v310 = vld [vmem:[#allocation7 + $0x14c] sm:$0xf]
    %v311 = vld [vmem:[#allocation7 + $0x150] sm:$0xff]
    %v312 = vld [vmem:[#allocation7 + $0x158] sm:$0xf]
    %v313 = vld [vmem:[#allocation7 + $0x15c] sm:$0xff]
    %v314 = vld [vmem:[#allocation7 + $0x164] sm:$0xf]
    %v315 = vld [vmem:[#allocation7 + $0x168] sm:$0xff]
    %v316 = vld [vmem:[#allocation7 + $0x170] sm:$0xf]
    %v317 = vld [vmem:[#allocation7 + $0x174] sm:$0xff]
    %v318 = vld [vmem:[#allocation7 + $0x17c] sm:$0xf]
    %v319 = vld [vmem:[#allocation7 + $0x180] sm:$0xff]
    %v320 = vld [vmem:[#allocation7 + $0x188] sm:$0xf]
    %v321 = vld [vmem:[#allocation7 + $0x18c] sm:$0xff]
    %v322 = vld [vmem:[#allocation7 + $0x194] sm:$0xf]
    %v323 = vld [vmem:[#allocation7 + $0x198] sm:$0xff]
    %v324 = vld [vmem:[#allocation7 + $0x1a0] sm:$0xf]
    %v325 = vld [vmem:[#allocation7 + $0x1a4] sm:$0xff]
    %v326 = vld [vmem:[#allocation7 + $0x1ac] sm:$0xf]
    %v327 = vld [vmem:[#allocation7 + $0x1b0] sm:$0xff]
    %v328 = vld [vmem:[#allocation7 + $0x1b8] sm:$0xf]
    %v329 = vld [vmem:[#allocation7 + $0x1bc] sm:$0xff]
    %v330 = vld [vmem:[#allocation7 + $0x1c4] sm:$0xf]
    %v331 = vld [vmem:[#allocation7 + $0x1c8] sm:$0xff]
    %v332 = vld [vmem:[#allocation7 + $0x1d0] sm:$0xf]
    %v333 = vld [vmem:[#allocation7 + $0x1d4] sm:$0xff]
    %v334 = vld [vmem:[#allocation7 + $0x1dc] sm:$0xf]
    %v335 = vld [vmem:[#allocation7 + $0x1e0] sm:$0xff]
    %v336 = vld [vmem:[#allocation7 + $0x1e8] sm:$0xf]
    %v337 = vld [vmem:[#allocation7 + $0x1ec] sm:$0xff]
    %v338 = vld [vmem:[#allocation7 + $0x1f4] sm:$0xf]
    %v339 = vld [vmem:[#allocation7 + $0x1f8] sm:$0xff]
    %v340 = vld [vmem:[#allocation7 + $0x200] sm:$0xf]
    %v341 = vld [vmem:[#allocation7 + $0x204] sm:$0xff]
    %v342 = vld [vmem:[#allocation7 + $0x20c] sm:$0xf]
    %v343 = vld [vmem:[#allocation7 + $0x210] sm:$0xff]
    %v344 = vld [vmem:[#allocation7 + $0x218] sm:$0xf]
    %v345 = vld [vmem:[#allocation7 + $0x21c] sm:$0xff]
    %v346 = vld [vmem:[#allocation7 + $0x224] sm:$0xf]
    %v347 = vld [vmem:[#allocation7 + $0x228] sm:$0xff]
    %v348 = vld [vmem:[#allocation7 + $0x230] sm:$0xf]
    %v349 = vld [vmem:[#allocation7 + $0x234] sm:$0xff]
    %v350 = vld [vmem:[#allocation7 + $0x23c] sm:$0xf]
    %v351 = vld [vmem:[#allocation7 + $0x240] sm:$0xff]
    %v352 = vld [vmem:[#allocation7 + $0x248] sm:$0xf]
    %v353 = vld [vmem:[#allocation7 + $0x24c] sm:$0xff]
    %v354 = vld [vmem:[#allocation7 + $0x254] sm:$0xf]
    %v355 = vld [vmem:[#allocation7 + $0x258] sm:$0xff]
    %v356 = vld [vmem:[#allocation7 + $0x260] sm:$0xf]
    %v357 = vld [vmem:[#allocation7 + $0x264] sm:$0xff]
    %v358 = vld [vmem:[#allocation7 + $0x26c] sm:$0xf]
    %v359 = vld [vmem:[#allocation7 + $0x270] sm:$0xff]
    %v360 = vld [vmem:[#allocation7 + $0x278] sm:$0xf]
    %v361 = vld [vmem:[#allocation7 + $0x27c] sm:$0xff]
    %v362 = vld [vmem:[#allocation7 + $0x284] sm:$0xf]
    %v363 = vld [vmem:[#allocation7 + $0x288] sm:$0xff]
    %v364 = vld [vmem:[#allocation7 + $0x290] sm:$0xf]
    %v365 = vld [vmem:[#allocation7 + $0x294] sm:$0xff]
    %v366 = vld [vmem:[#allocation7 + $0x29c] sm:$0xf]
    %v367 = vld [vmem:[#allocation7 + $0x2a0] sm:$0xff]
    %v368 = vld [vmem:[#allocation7 + $0x2a8] sm:$0xf]
    %v369 = vld [vmem:[#allocation7 + $0x2ac] sm:$0xff]
    %v370 = vld [vmem:[#allocation7 + $0x2b4] sm:$0xf]
    %v371 = vld [vmem:[#allocation7 + $0x2b8] sm:$0xff]
    %v372 = vld [vmem:[#allocation7 + $0x2c0] sm:$0xf]
    %v373 = vld [vmem:[#allocation7 + $0x2c4] sm:$0xff]
    %v374 = vld [vmem:[#allocation7 + $0x2cc] sm:$0xf]
    %v375 = vld [vmem:[#allocation7 + $0x2d0] sm:$0xff]
    %v376 = vld [vmem:[#allocation7 + $0x2d8] sm:$0xf]
    %v377 = vld [vmem:[#allocation7 + $0x2dc] sm:$0xff]
    %v378 = vld [vmem:[#allocation7 + $0x2e4] sm:$0xf]
    %v379 = vld [vmem:[#allocation7 + $0x2e8] sm:$0xff]
    %v380 = vld [vmem:[#allocation7 + $0x2f0] sm:$0xf]
    %v381 = vld [vmem:[#allocation7 + $0x2f4] sm:$0xff]
    %v382 = vld [vmem:[#allocation7 + $0x2fc] sm:$0xf]
    %v383 = vld [vmem:[%s4] sm:$0x7]
    %v385 = vlaneseq
    %v386 = vshrl.u32 %v385, 7
    %v387 = vsub.s32 0, %v386
    %v388 = vrot.slane %v383, %v387
    %v389 = vlaneseq
    %v390 = vshrl.u32 %v389, 7
    %v391 = vsub.s32 1, %v390
    %v392 = vrot.slane %v383, %v391
    %v393 = vlaneseq
    %v394 = vshrl.u32 %v393, 7
    %v395 = vsub.s32 2, %v394
    %v396 = vrot.slane %v383, %v395
    %v528 = vunpack.c.l.b16 %v255
    %v529 = vunpack.c.h.b16 %v255
    %v530 = vunpack.c.l.b16 %v256
    %v531 = vunpack.c.l.b16 %v257
    %v532 = vunpack.c.h.b16 %v257
    %v533 = vunpack.c.l.b16 %v258
    %v534 = vunpack.c.l.b16 %v259
    %v535 = vunpack.c.h.b16 %v259
    %v536 = vunpack.c.l.b16 %v260
    %v537 = vunpack.c.l.b16 %v261
    %v538 = vunpack.c.h.b16 %v261
    %v539 = vunpack.c.l.b16 %v262
    %v540 = vunpack.c.l.b16 %v263
    %v541 = vunpack.c.h.b16 %v263
    %v542 = vunpack.c.l.b16 %v264
    %v543 = vunpack.c.l.b16 %v265
    %v544 = vunpack.c.h.b16 %v265
    %v545 = vunpack.c.l.b16 %v266
    %v546 = vunpack.c.l.b16 %v267
    %v547 = vunpack.c.h.b16 %v267
    %v548 = vunpack.c.l.b16 %v268
    %v549 = vunpack.c.l.b16 %v269
    %v550 = vunpack.c.h.b16 %v269
    %v551 = vunpack.c.l.b16 %v270
    %v552 = vunpack.c.l.b16 %v271
    %v553 = vunpack.c.h.b16 %v271
    %v554 = vunpack.c.l.b16 %v272
    %v555 = vunpack.c.l.b16 %v273
    %v556 = vunpack.c.h.b16 %v273
    %v557 = vunpack.c.l.b16 %v274
    %v558 = vunpack.c.l.b16 %v275
    %v559 = vunpack.c.h.b16 %v275
    %v560 = vunpack.c.l.b16 %v276
    %v561 = vunpack.c.l.b16 %v277
    %v562 = vunpack.c.h.b16 %v277
    %v563 = vunpack.c.l.b16 %v278
    %v564 = vunpack.c.l.b16 %v279
    %v565 = vunpack.c.h.b16 %v279
    %v566 = vunpack.c.l.b16 %v280
    %v567 = vunpack.c.l.b16 %v281
    %v568 = vunpack.c.h.b16 %v281
    %v569 = vunpack.c.l.b16 %v282
    %v570 = vunpack.c.l.b16 %v283
    %v571 = vunpack.c.h.b16 %v283
    %v572 = vunpack.c.l.b16 %v284
    %v573 = vunpack.c.l.b16 %v285
    %v574 = vunpack.c.h.b16 %v285
    %v575 = vunpack.c.l.b16 %v286
    %v576 = vunpack.c.l.b16 %v287
    %v577 = vunpack.c.h.b16 %v287
    %v578 = vunpack.c.l.b16 %v288
    %v579 = vunpack.c.l.b16 %v289
    %v580 = vunpack.c.h.b16 %v289
    %v581 = vunpack.c.l.b16 %v290
    %v582 = vunpack.c.l.b16 %v291
    %v583 = vunpack.c.h.b16 %v291
    %v584 = vunpack.c.l.b16 %v292
    %v585 = vunpack.c.l.b16 %v293
    %v586 = vunpack.c.h.b16 %v293
    %v587 = vunpack.c.l.b16 %v294
    %v588 = vunpack.c.l.b16 %v295
    %v589 = vunpack.c.h.b16 %v295
    %v590 = vunpack.c.l.b16 %v296
    %v591 = vunpack.c.l.b16 %v297
    %v592 = vunpack.c.h.b16 %v297
    %v593 = vunpack.c.l.b16 %v298
    %v594 = vunpack.c.l.b16 %v299
    %v595 = vunpack.c.h.b16 %v299
    %v596 = vunpack.c.l.b16 %v300
    %v597 = vunpack.c.l.b16 %v301
    %v598 = vunpack.c.h.b16 %v301
    %v599 = vunpack.c.l.b16 %v302
    %v600 = vunpack.c.l.b16 %v303
    %v601 = vunpack.c.h.b16 %v303
    %v602 = vunpack.c.l.b16 %v304
    %v603 = vunpack.c.l.b16 %v305
    %v604 = vunpack.c.h.b16 %v305
    %v605 = vunpack.c.l.b16 %v306
    %v606 = vunpack.c.l.b16 %v307
    %v607 = vunpack.c.h.b16 %v307
    %v608 = vunpack.c.l.b16 %v308
    %v609 = vunpack.c.l.b16 %v309
    %v610 = vunpack.c.h.b16 %v309
    %v611 = vunpack.c.l.b16 %v310
    %v612 = vunpack.c.l.b16 %v311
    %v613 = vunpack.c.h.b16 %v311
    %v614 = vunpack.c.l.b16 %v312
    %v615 = vunpack.c.l.b16 %v313
    %v616 = vunpack.c.h.b16 %v313
    %v617 = vunpack.c.l.b16 %v314
    %v618 = vunpack.c.l.b16 %v315
    %v619 = vunpack.c.h.b16 %v315
    %v620 = vunpack.c.l.b16 %v316
    %v621 = vunpack.c.l.b16 %v317
    %v622 = vunpack.c.h.b16 %v317
    %v623 = vunpack.c.l.b16 %v318
    %v624 = vunpack.c.l.b16 %v319
    %v625 = vunpack.c.h.b16 %v319
    %v626 = vunpack.c.l.b16 %v320
    %v627 = vunpack.c.l.b16 %v321
    %v628 = vunpack.c.h.b16 %v321
    %v629 = vunpack.c.l.b16 %v322
    %v630 = vunpack.c.l.b16 %v323
    %v631 = vunpack.c.h.b16 %v323
    %v632 = vunpack.c.l.b16 %v324
    %v633 = vunpack.c.l.b16 %v325
    %v634 = vunpack.c.h.b16 %v325
    %v635 = vunpack.c.l.b16 %v326
    %v636 = vunpack.c.l.b16 %v327
    %v637 = vunpack.c.h.b16 %v327
    %v638 = vunpack.c.l.b16 %v328
    %v639 = vunpack.c.l.b16 %v329
    %v640 = vunpack.c.h.b16 %v329
    %v641 = vunpack.c.l.b16 %v330
    %v642 = vunpack.c.l.b16 %v331
    %v643 = vunpack.c.h.b16 %v331
    %v644 = vunpack.c.l.b16 %v332
    %v645 = vunpack.c.l.b16 %v333
    %v646 = vunpack.c.h.b16 %v333
    %v647 = vunpack.c.l.b16 %v334
    %v648 = vunpack.c.l.b16 %v335
    %v649 = vunpack.c.h.b16 %v335
    %v650 = vunpack.c.l.b16 %v336
    %v651 = vunpack.c.l.b16 %v337
    %v652 = vunpack.c.h.b16 %v337
    %v653 = vunpack.c.l.b16 %v338
    %v654 = vunpack.c.l.b16 %v339
    %v655 = vunpack.c.h.b16 %v339
    %v656 = vunpack.c.l.b16 %v340
    %v657 = vunpack.c.l.b16 %v341
    %v658 = vunpack.c.h.b16 %v341
    %v659 = vunpack.c.l.b16 %v342
    %v660 = vunpack.c.l.b16 %v343
    %v661 = vunpack.c.h.b16 %v343
    %v662 = vunpack.c.l.b16 %v344
    %v663 = vunpack.c.l.b16 %v345
    %v664 = vunpack.c.h.b16 %v345
    %v665 = vunpack.c.l.b16 %v346
    %v666 = vunpack.c.l.b16 %v347
    %v667 = vunpack.c.h.b16 %v347
    %v668 = vunpack.c.l.b16 %v348
    %v669 = vunpack.c.l.b16 %v349
    %v670 = vunpack.c.h.b16 %v349
    %v671 = vunpack.c.l.b16 %v350
    %v672 = vunpack.c.l.b16 %v351
    %v673 = vunpack.c.h.b16 %v351
    %v674 = vunpack.c.l.b16 %v352
    %v675 = vunpack.c.l.b16 %v353
    %v676 = vunpack.c.h.b16 %v353
    %v677 = vunpack.c.l.b16 %v354
    %v678 = vunpack.c.l.b16 %v355
    %v679 = vunpack.c.h.b16 %v355
    %v680 = vunpack.c.l.b16 %v356
    %v681 = vunpack.c.l.b16 %v357
    %v682 = vunpack.c.h.b16 %v357
    %v683 = vunpack.c.l.b16 %v358
    %v684 = vunpack.c.l.b16 %v359
    %v685 = vunpack.c.h.b16 %v359
    %v686 = vunpack.c.l.b16 %v360
    %v687 = vunpack.c.l.b16 %v361
    %v688 = vunpack.c.h.b16 %v361
    %v689 = vunpack.c.l.b16 %v362
    %v690 = vunpack.c.l.b16 %v363
    %v691 = vunpack.c.h.b16 %v363
    %v692 = vunpack.c.l.b16 %v364
    %v693 = vunpack.c.l.b16 %v365
    %v694 = vunpack.c.h.b16 %v365
    %v695 = vunpack.c.l.b16 %v366
    %v696 = vunpack.c.l.b16 %v367
    %v697 = vunpack.c.h.b16 %v367
    %v698 = vunpack.c.l.b16 %v368
    %v699 = vunpack.c.l.b16 %v369
    %v700 = vunpack.c.h.b16 %v369
    %v701 = vunpack.c.l.b16 %v370
    %v702 = vunpack.c.l.b16 %v371
    %v703 = vunpack.c.h.b16 %v371
    %v704 = vunpack.c.l.b16 %v372
    %v705 = vunpack.c.l.b16 %v373
    %v706 = vunpack.c.h.b16 %v373
    %v707 = vunpack.c.l.b16 %v374
    %v708 = vunpack.c.l.b16 %v375
    %v709 = vunpack.c.h.b16 %v375
    %v710 = vunpack.c.l.b16 %v376
    %v711 = vunpack.c.l.b16 %v377
    %v712 = vunpack.c.h.b16 %v377
    %v713 = vunpack.c.l.b16 %v378
    %v714 = vunpack.c.l.b16 %v379
    %v715 = vunpack.c.h.b16 %v379
    %v716 = vunpack.c.l.b16 %v380
    %v717 = vunpack.c.l.b16 %v381
    %v718 = vunpack.c.h.b16 %v381
    %v719 = vunpack.c.l.b16 %v382
    %v720 = vpack.c.b16 %v531, %v528
    %v721 = vpack.c.b16 %v532, %v529
    %v722 = vpack.c.b16 %v533, %v530
    %v723 = vpack.c.b16 %v537, %v534
    %v724 = vpack.c.b16 %v538, %v535
    %v725 = vpack.c.b16 %v539, %v536
    %v726 = vpack.c.b16 %v543, %v540
    %v727 = vpack.c.b16 %v544, %v541
    %v728 = vpack.c.b16 %v545, %v542
    %v729 = vpack.c.b16 %v549, %v546
    %v730 = vpack.c.b16 %v550, %v547
    %v731 = vpack.c.b16 %v551, %v548
    %v732 = vpack.c.b16 %v555, %v552
    %v733 = vpack.c.b16 %v556, %v553
    %v734 = vpack.c.b16 %v557, %v554
    %v735 = vpack.c.b16 %v561, %v558
    %v736 = vpack.c.b16 %v562, %v559
    %v737 = vpack.c.b16 %v563, %v560
    %v738 = vpack.c.b16 %v567, %v564
    %v739 = vpack.c.b16 %v568, %v565
    %v740 = vpack.c.b16 %v569, %v566
    %v741 = vpack.c.b16 %v573, %v570
    %v742 = vpack.c.b16 %v574, %v571
    %v743 = vpack.c.b16 %v575, %v572
    %v744 = vpack.c.b16 %v579, %v576
    %v745 = vpack.c.b16 %v580, %v577
    %v746 = vpack.c.b16 %v581, %v578
    %v747 = vpack.c.b16 %v585, %v582
    %v748 = vpack.c.b16 %v586, %v583
    %v749 = vpack.c.b16 %v587, %v584
    %v750 = vpack.c.b16 %v591, %v588
    %v751 = vpack.c.b16 %v592, %v589
    %v752 = vpack.c.b16 %v593, %v590
    %v753 = vpack.c.b16 %v597, %v594
    %v754 = vpack.c.b16 %v598, %v595
    %v755 = vpack.c.b16 %v599, %v596
    %v756 = vpack.c.b16 %v603, %v600
    %v757 = vpack.c.b16 %v604, %v601
    %v758 = vpack.c.b16 %v605, %v602
    %v759 = vpack.c.b16 %v609, %v606
    %v760 = vpack.c.b16 %v610, %v607
    %v761 = vpack.c.b16 %v611, %v608
    %v762 = vpack.c.b16 %v615, %v612
    %v763 = vpack.c.b16 %v616, %v613
    %v764 = vpack.c.b16 %v617, %v614
    %v765 = vpack.c.b16 %v621, %v618
    %v766 = vpack.c.b16 %v622, %v619
    %v767 = vpack.c.b16 %v623, %v620
    %v768 = vpack.c.b16 %v627, %v624
    %v769 = vpack.c.b16 %v628, %v625
    %v770 = vpack.c.b16 %v629, %v626
    %v771 = vpack.c.b16 %v633, %v630
    %v772 = vpack.c.b16 %v634, %v631
    %v773 = vpack.c.b16 %v635, %v632
    %v774 = vpack.c.b16 %v639, %v636
    %v775 = vpack.c.b16 %v640, %v637
    %v776 = vpack.c.b16 %v641, %v638
    %v777 = vpack.c.b16 %v645, %v642
    %v778 = vpack.c.b16 %v646, %v643
    %v779 = vpack.c.b16 %v647, %v644
    %v780 = vpack.c.b16 %v651, %v648
    %v781 = vpack.c.b16 %v652, %v649
    %v782 = vpack.c.b16 %v653, %v650
    %v783 = vpack.c.b16 %v657, %v654
    %v784 = vpack.c.b16 %v658, %v655
    %v785 = vpack.c.b16 %v659, %v656
    %v786 = vpack.c.b16 %v663, %v660
    %v787 = vpack.c.b16 %v664, %v661
    %v788 = vpack.c.b16 %v665, %v662
    %v789 = vpack.c.b16 %v669, %v666
    %v790 = vpack.c.b16 %v670, %v667
    %v791 = vpack.c.b16 %v671, %v668
    %v792 = vpack.c.b16 %v675, %v672
    %v793 = vpack.c.b16 %v676, %v673
    %v794 = vpack.c.b16 %v677, %v674
    %v795 = vpack.c.b16 %v681, %v678
    %v796 = vpack.c.b16 %v682, %v679
    %v797 = vpack.c.b16 %v683, %v680
    %v798 = vpack.c.b16 %v687, %v684
    %v799 = vpack.c.b16 %v688, %v685
    %v800 = vpack.c.b16 %v689, %v686
    %v801 = vpack.c.b16 %v693, %v690
    %v802 = vpack.c.b16 %v694, %v691
    %v803 = vpack.c.b16 %v695, %v692
    %v804 = vpack.c.b16 %v699, %v696
    %v805 = vpack.c.b16 %v700, %v697
    %v806 = vpack.c.b16 %v701, %v698
    %v807 = vpack.c.b16 %v705, %v702
    %v808 = vpack.c.b16 %v706, %v703
    %v809 = vpack.c.b16 %v707, %v704
    %v810 = vpack.c.b16 %v711, %v708
    %v811 = vpack.c.b16 %v712, %v709
    %v812 = vpack.c.b16 %v713, %v710
    %v813 = vpack.c.b16 %v717, %v714
    %v814 = vpack.c.b16 %v718, %v715
    %v815 = vpack.c.b16 %v719, %v716
    %912 = vmatprep.subr.bf16.mxu0 %v721
    %913 = vmatpush1.bf16.msra.mxu0 %v720
    %914 = vmatprep.subr.bf16.mxu0 %v724
    %915 = vmatpush1.bf16.msra.mxu0 %v723
    %916 = vmatprep.subr.bf16.mxu0 %v727
    %917 = vmatpush1.bf16.msra.mxu0 %v726
    %918 = vmatprep.subr.bf16.mxu0 %v730
    %919 = vmatpush1.bf16.msra.mxu0 %v729
    %920 = vmatprep.subr.bf16.mxu0 %v733
    %921 = vmatpush1.bf16.msra.mxu0 %v732
    %922 = vmatprep.subr.bf16.mxu0 %v736
    %923 = vmatpush1.bf16.msra.mxu0 %v735
    %924 = vmatprep.subr.bf16.mxu0 %v739
    %925 = vmatpush1.bf16.msra.mxu0 %v738
    %926 = vmatprep.subr.bf16.mxu0 %v742
    %927 = vmatpush1.bf16.msra.mxu0 %v741
    %928 = vmatprep.subr.bf16.mxu0 %v745
    %929 = vmatpush1.bf16.msra.mxu0 %v744
    %930 = vmatprep.subr.bf16.mxu0 %v748
    %931 = vmatpush1.bf16.msra.mxu0 %v747
    %932 = vmatprep.subr.bf16.mxu0 %v751
    %933 = vmatpush1.bf16.msra.mxu0 %v750
    %934 = vmatprep.subr.bf16.mxu0 %v754
    %935 = vmatpush1.bf16.msra.mxu0 %v753
    %936 = vmatprep.subr.bf16.mxu0 %v757
    %937 = vmatpush1.bf16.msra.mxu0 %v756
    %938 = vmatprep.subr.bf16.mxu0 %v760
    %939 = vmatpush1.bf16.msra.mxu0 %v759
    %940 = vmatprep.subr.bf16.mxu0 %v763
    %941 = vmatpush1.bf16.msra.mxu0 %v762
    %942 = vmatprep.subr.bf16.mxu0 %v766
    %943 = vmatpush1.bf16.msra.mxu0 %v765
    %944 = vmatprep.mubr.bf16.mxu0 %v252
    %945 = vmatmul.mubr.bf16.gmra.mrb[0].mxu0 %v251
    %v946 = vpop.f32.mrb[0].mxu0
    %v947 = vadd.f32 %v388, %v946
    %v948 = vpop.f32.mrb[0].mxu0
    %v949 = vadd.f32 %v392, %v948
    %v950 = vpop.f32.mrb[0].mxu0
    %v951 = vpop.f32.mrb[0].mxu0
    %952 = vdwg.mxu0
    %953 = vmatprep.subr.bf16.mxu0 %v769
    %954 = vmatpush1.bf16.msra.mxu0 %v768
    %955 = vmatprep.subr.bf16.mxu0 %v772
    %956 = vmatpush1.bf16.msra.mxu0 %v771
    %957 = vmatprep.subr.bf16.mxu0 %v775
    %958 = vmatpush1.bf16.msra.mxu0 %v774
    %959 = vmatprep.subr.bf16.mxu0 %v778
    %960 = vmatpush1.bf16.msra.mxu0 %v777
    %961 = vmatprep.subr.bf16.mxu0 %v781
    %962 = vmatpush1.bf16.msra.mxu0 %v780
    %963 = vmatprep.subr.bf16.mxu0 %v784
    %964 = vmatpush1.bf16.msra.mxu0 %v783
    %965 = vmatprep.subr.bf16.mxu0 %v787
    %966 = vmatpush1.bf16.msra.mxu0 %v786
    %967 = vmatprep.subr.bf16.mxu0 %v790
    %968 = vmatpush1.bf16.msra.mxu0 %v789
    %969 = vmatprep.subr.bf16.mxu0 %v793
    %970 = vmatpush1.bf16.msra.mxu0 %v792
    %971 = vmatprep.subr.bf16.mxu0 %v796
    %972 = vmatpush1.bf16.msra.mxu0 %v795
    %973 = vmatprep.subr.bf16.mxu0 %v799
    %974 = vmatpush1.bf16.msra.mxu0 %v798
    %975 = vmatprep.subr.bf16.mxu0 %v802
    %976 = vmatpush1.bf16.msra.mxu0 %v801
    %977 = vmatprep.subr.bf16.mxu0 %v805
    %978 = vmatpush1.bf16.msra.mxu0 %v804
    %979 = vmatprep.subr.bf16.mxu0 %v808
    %980 = vmatpush1.bf16.msra.mxu0 %v807
    %981 = vmatprep.subr.bf16.mxu0 %v811
    %982 = vmatpush1.bf16.msra.mxu0 %v810
    %983 = vmatprep.subr.bf16.mxu0 %v814
    %984 = vmatpush1.bf16.msra.mxu0 %v813
    %985 = vmatprep.mubr.bf16.mxu0 %v254
    %986 = vmatmul.mubr.bf16.gmra.mrb[0].mxu0 %v253
    %v987 = vpop.f32.mrb[0].mxu0
    %v988 = vadd.f32 %v947, %v987
    %v989 = vpop.f32.mrb[0].mxu0
    %v990 = vadd.f32 %v949, %v989
    %v991 = vpop.f32.mrb[0].mxu0
    %v992 = vpop.f32.mrb[0].mxu0
    %993 = vdwg.mxu0
    %994 = vmatprep.subr.bf16.mxu0 0
    %995 = vmatpush1.bf16.msra.mxu0 %v722
    %996 = vmatprep.subr.bf16.mxu0 0
    %997 = vmatpush1.bf16.msra.mxu0 %v725
    %998 = vmatprep.subr.bf16.mxu0 0
    %999 = vmatpush1.bf16.msra.mxu0 %v728
    %1000 = vmatprep.subr.bf16.mxu0 0
    %1001 = vmatpush1.bf16.msra.mxu0 %v731
    %1002 = vmatprep.subr.bf16.mxu0 0
    %1003 = vmatpush1.bf16.msra.mxu0 %v734
    %1004 = vmatprep.subr.bf16.mxu0 0
    %1005 = vmatpush1.bf16.msra.mxu0 %v737
    %1006 = vmatprep.subr.bf16.mxu0 0
    %1007 = vmatpush1.bf16.msra.mxu0 %v740
    %1008 = vmatprep.subr.bf16.mxu0 0
    %1009 = vmatpush1.bf16.msra.mxu0 %v743
    %1010 = vmatprep.subr.bf16.mxu0 0
    %1011 = vmatpush1.bf16.msra.mxu0 %v746
    %1012 = vmatprep.subr.bf16.mxu0 0
    %1013 = vmatpush1.bf16.msra.mxu0 %v749
    %1014 = vmatprep.subr.bf16.mxu0 0
    %1015 = vmatpush1.bf16.msra.mxu0 %v752
    %1016 = vmatprep.subr.bf16.mxu0 0
    %1017 = vmatpush1.bf16.msra.mxu0 %v755
    %1018 = vmatprep.subr.bf16.mxu0 0
    %1019 = vmatpush1.bf16.msra.mxu0 %v758
    %1020 = vmatprep.subr.bf16.mxu0 0
    %1021 = vmatpush1.bf16.msra.mxu0 %v761
    %1022 = vmatprep.subr.bf16.mxu0 0
    %1023 = vmatpush1.bf16.msra.mxu0 %v764
    %1024 = vmatprep.subr.bf16.mxu0 0
    %1025 = vmatpush1.bf16.msra.mxu0 %v767
    %1026 = vmatprep.mubr.bf16.mxu0 %v252
    %1027 = vmatmul.mubr.bf16.gmra.mrb[0].mxu0 %v251
    %v1028 = vpop.f32.mrb[0].mxu0
    %v1029 = vadd.f32 %v396, %v1028
    %v1030 = vpop.f32.mrb[0].mxu0
    %v1031 = vpop.f32.mrb[0].mxu0
    %v1032 = vpop.f32.mrb[0].mxu0
    %1033 = vdwg.mxu0
    %1034 = vmatprep.subr.bf16.mxu0 0
    %1035 = vmatpush1.bf16.msra.mxu0 %v770
    %1036 = vmatprep.subr.bf16.mxu0 0
    %1037 = vmatpush1.bf16.msra.mxu0 %v773
    %1038 = vmatprep.subr.bf16.mxu0 0
    %1039 = vmatpush1.bf16.msra.mxu0 %v776
    %1040 = vmatprep.subr.bf16.mxu0 0
    %1041 = vmatpush1.bf16.msra.mxu0 %v779
    %1042 = vmatprep.subr.bf16.mxu0 0
    %1043 = vmatpush1.bf16.msra.mxu0 %v782
    %1044 = vmatprep.subr.bf16.mxu0 0
    %1045 = vmatpush1.bf16.msra.mxu0 %v785
    %1046 = vmatprep.subr.bf16.mxu0 0
    %1047 = vmatpush1.bf16.msra.mxu0 %v788
    %1048 = vmatprep.subr.bf16.mxu0 0
    %1049 = vmatpush1.bf16.msra.mxu0 %v791
    %1050 = vmatprep.subr.bf16.mxu0 0
    %1051 = vmatpush1.bf16.msra.mxu0 %v794
    %1052 = vmatprep.subr.bf16.mxu0 0
    %1053 = vmatpush1.bf16.msra.mxu0 %v797
    %1054 = vmatprep.subr.bf16.mxu0 0
    %1055 = vmatpush1.bf16.msra.mxu0 %v800
    %1056 = vmatprep.subr.bf16.mxu0 0
    %1057 = vmatpush1.bf16.msra.mxu0 %v803
    %1058 = vmatprep.subr.bf16.mxu0 0
    %1059 = vmatpush1.bf16.msra.mxu0 %v806
    %1060 = vmatprep.subr.bf16.mxu0 0
    %1061 = vmatpush1.bf16.msra.mxu0 %v809
    %1062 = vmatprep.subr.bf16.mxu0 0
    %1063 = vmatpush1.bf16.msra.mxu0 %v812
    %1064 = vmatprep.subr.bf16.mxu0 0
    %1065 = vmatpush1.bf16.msra.mxu0 %v815
    %1066 = vmatprep.mubr.bf16.mxu0 %v254
    %1067 = vmatmul.mubr.bf16.gmra.mrb[0].mxu0 %v253
    %v1068 = vpop.f32.mrb[0].mxu0
    %v1069 = vadd.f32 %v1029, %v1068
    %v1070 = vpop.f32.mrb[0].mxu0
    %v1071 = vpop.f32.mrb[0].mxu0
    %v1072 = vpop.f32.mrb[0].mxu0
    %1073 = vdwg.mxu0
    %v1074 = vmax.f32 %v988, 0.0
    %v1075 = vmax.f32 %v990, 0.0
    %v1076 = vmax.f32 %v1069, 0.0
    %v1077 = vld [vmem:[%s5] sm:$0x7]
    %v1079 = vlaneseq
    %v1080 = vshrl.u32 %v1079, 7
    %v1081 = vsub.s32 0, %v1080
    %v1082 = vrot.slane %v1077, %v1081
    %v1083 = vlaneseq
    %v1084 = vshrl.u32 %v1083, 7
    %v1085 = vsub.s32 1, %v1084
    %v1086 = vrot.slane %v1077, %v1085
    %v1087 = vlaneseq
    %v1088 = vshrl.u32 %v1087, 7
    %v1089 = vsub.s32 2, %v1088
    %v1090 = vrot.slane %v1077, %v1089
    %v1094 = vmul.f32 %v1074, %v1082
    %v1095 = vmul.f32 %v1075, %v1086
    %v1096 = vmul.f32 %v1076, %v1090
    %v1097 = vadd.f32 %v1094, %v1095
    %v1098 = vadd.f32 %v1097, %v1096
    %1099 = vadd.xlane.f32.xlu0 %v1098
    %v1100 = vpop.xlane.xlu0 %1099
    %v1101 = vld [vmem:[#allocation2] sm:$0x1]
    %v1103 = vlaneseq
    %v1104 = vshrl.u32 %v1103, 7
    %v1105 = vsub.s32 0, %v1104
    %v1106 = vrot.slane %v1101, %v1105
    %v1108 = vadd.f32 %v1100, %v1106
    %vm1109 = vcmask 7168
    %1110 = vst.msk [vmem:[%s7] sm:$0xff] %vm1109, %v1108
    // Predicated region
    $region42: #{tpu_custom_call.1} parent=1 // pred_check
      _
    $region43: #{tpu_custom_call.1} parent=1 // pred_check_branch
      %1112 = sbr.rel (0) target = $region45
    $region44: #{tpu_custom_call.1} parent=1 // pred_region
      _
    $region45: #{tpu_custom_call.1} parent=1 // pred_fallthru
      _
    // Predicated region
    $region46: #{tpu_custom_call.1} parent=1 // pred_check
      _
    $region47: #{tpu_custom_call.1} parent=1 // pred_check_branch
      %1114 = sbr.rel (0) target = $region49
    $region48: #{tpu_custom_call.1} parent=1 // pred_region
      _
    $region49: #{tpu_custom_call.1} parent=1 // pred_fallthru
      _
    %1115 = vsyncpa [#allocation4], 1
    %1116 = vsyncpa [#allocation6], 1

</llo_original>
